<compile_context>
chip_gen: v7x
topology: tpu7x:2x2x1
jax: 0.10.0
libtpu: 0.0.40
codegen_flags: <defaults>
</compile_context>

<pallas_src>
import math

import jax
import jax.numpy as jnp
from jax.experimental import pallas as pl
from jax.experimental.pallas import tpu as pltpu


def _round_up(x, m):
    return ((x + m - 1) // m) * m


def _make_kernel(scale, bt, with_probs, approx_recip):
    def kernel(q_ref, hid_ref, bias_ref, *out_refs):
        ctx_ref = out_refs[0]
        probs_ref = out_refs[1] if with_probs else None

        q = q_ref[...]                       # (Ep, Hp)  mm_dtype, key proj. folded in
        for b in range(bt):                  # Bt is small and static -> unrolled
            hid_b = hid_ref[b]               # (Sp, Hp)  mm_dtype

            # scores[e, s] = sum_h q_eff[e, h] * hid[b, s, h]   (NT matmul, no
            # explicit transpose of hid — same contraction pattern as the
            # canonical flash-attention kernel).
            scores = jax.lax.dot_general(
                q, hid_b, dimension_numbers=(((1,), (1,)), ((), ())),
                preferred_element_type=jnp.float32) * scale           # (Ep, Sp) f32
            scores = scores + bias_ref[b]                              # (1, Sp) bcast

            # Numerically stable softmax along S (f32).
            m = jnp.max(scores, axis=-1, keepdims=True)
            e = jnp.exp(scores - m)
            probs = e * pl.reciprocal(jnp.sum(e, axis=-1, keepdims=True),
                                      approx=approx_recip)             # (Ep, Sp)

            # TODO(synk): training-mode dropout on attention_probs not implemented
            # (eval-mode identity).

            ctx = jnp.dot(probs.astype(hid_b.dtype), hid_b,
                          preferred_element_type=jnp.float32)           # (Ep, Hp)

            ctx_ref[b] = ctx.astype(ctx_ref.dtype)
            if probs_ref is not None:
                probs_ref[b] = probs.astype(probs_ref.dtype)

    return kernel


def entity_attention(entity_emb, hidden_states, attention_mask,
                     wq_t, bq, wk_t, bk, *,
                     output_attentions=True, use_bf16=True,
                     out_dtype=jnp.float32, approx_softmax=False):
    """entity_emb: (E,H); hidden_states: (B,S,H); attention_mask: (B,S) float (1=attend);
    wq_t/wk_t: (H,H) pre-transposed to (in,out); bq/bk: (1,H).

    Returns (context_layer, attention_probs) if output_attentions else (context_layer,).
    """
    E, H = entity_emb.shape
    B, S, _ = hidden_states.shape
    scale = 1.0 / math.sqrt(H)            # module divides by sqrt(hidden_size)

    if attention_mask is None:
        attention_mask = jnp.ones((B, S), dtype=jnp.float32)

    mm_dtype = jnp.bfloat16 if use_bf16 else jnp.float32
    itemsize = jnp.dtype(mm_dtype).itemsize
    out_itemsize = jnp.dtype(out_dtype).itemsize

    # ---- Hoisted, batch-invariant projections (computed once by XLA, in f32) ----
    q = (entity_emb.astype(jnp.float32) @ wq_t.astype(jnp.float32)
         + bq.astype(jnp.float32))                                     # (E, H)
    # Fold the key projection into the query side (see module header).  The
    # q @ bk^T term is constant along the softmax axis and cancels exactly.
    q_eff = q @ wk_t.astype(jnp.float32).T                             # (E, H)

    # ---- Additive mask bias precomputed in the wrapper: (1 - mask) * -1e4 ----
    bias = (1.0 - attention_mask.astype(jnp.float32)) * -10000.0       # (B, S)

    # ---- Lane-dense, MXU-friendly padded shapes ----
    Hp = _round_up(H, 128)
    Sp = _round_up(S, 128)
    Ep = _round_up(E, 8)

    # Target ~4 MiB hidden_states tiles (large efficient DMAs, amortized
    # per-grid-step overhead on v5e/v6e's 128 MiB VMEM) ...
    target_blk_bytes = 4 << 20
    Bt = max(1, min(B, target_blk_bytes // (Sp * Hp * itemsize)))
    # ... but keep the grid >= 2 steps so both v7x TensorCores get work.
    if B >= 2:
        Bt = min(Bt, max(1, B // 2))

    def _blk_bytes(bt):
        return (Ep * Hp * itemsize            # q_eff (grid-invariant)
                + bt * Sp * Hp * itemsize     # hidden_states tile
                + bt * Sp * 4                 # mask bias
                + bt * Ep * Hp * out_itemsize # ctx out
                + (bt * Ep * Sp * out_itemsize if output_attentions else 0))

    scratch_bytes = 3 * Ep * Sp * 4 + Ep * Hp * 4   # scores/exp/probs + ctx temps
    # Shrink Bt if double-buffered blocks would not fit a v7x-safe budget.
    while Bt > 1 and 2 * _blk_bytes(Bt) + scratch_bytes > (44 << 20):
        Bt -= 1
    Bp = _round_up(B, Bt)

    # ---- Cast to matmul dtype FIRST, pad second; skip padding when aligned ----
    hid_mm = hidden_states.astype(mm_dtype)
    if (Bp, Sp, Hp) != (B, S, H):
        hid_mm = jnp.pad(hid_mm, ((0, Bp - B), (0, Sp - S), (0, Hp - H)))
    q_p = q_eff.astype(mm_dtype)
    if (Ep, Hp) != (E, H):
        q_p = jnp.pad(q_p, ((0, Ep - E), (0, Hp - H)))
    # Padded key positions / batches get the same -1e4 suppression as masked
    # positions (exp underflows to exactly 0 in f32, so padding does not
    # perturb the softmax).
    bias_p = bias
    if (Bp, Sp) != (B, S):
        bias_p = jnp.pad(bias, ((0, Bp - B), (0, Sp - S)),
                         constant_values=-10000.0)
    bias_p = bias_p.reshape(Bp, 1, Sp)

    grid = (Bp // Bt,)

    in_specs = [
        pl.BlockSpec((Ep, Hp), lambda g: (0, 0)),          # q_eff (grid-invariant)
        pl.BlockSpec((Bt, Sp, Hp), lambda g: (g, 0, 0)),   # hidden_states tile
        pl.BlockSpec((Bt, 1, Sp), lambda g: (g, 0, 0)),    # mask bias tile
    ]
    out_shapes = [jax.ShapeDtypeStruct((Bp, Ep, Hp), out_dtype)]
    out_specs = [pl.BlockSpec((Bt, Ep, Hp), lambda g: (g, 0, 0))]
    if output_attentions:
        out_shapes.append(jax.ShapeDtypeStruct((Bp, Ep, Sp), out_dtype))
        out_specs.append(pl.BlockSpec((Bt, Ep, Sp), lambda g: (g, 0, 0)))

    # ---- Advisory cost estimate for XLA's scheduler ----
    flops = 4 * Bp * Ep * Sp * Hp                      # scores + ctx matmuls
    transcendentals = Bp * Ep * Sp                     # exp
    bytes_accessed = (Ep * Hp * itemsize
                      + Bp * Sp * Hp * itemsize
                      + Bp * Sp * 4
                      + Bp * Ep * Hp * out_itemsize
                      + (Bp * Ep * Sp * out_itemsize if output_attentions else 0))
    cost = pl.CostEstimate(flops=flops, transcendentals=transcendentals,
                           bytes_accessed=bytes_accessed)

    # ---- Explicit VMEM budget; cap at 48 MiB for headroom on v7x (64 MiB/TC) ----
    vmem_limit = int(min(48 << 20,
                         max(16 << 20, 2 * _blk_bytes(Bt) + scratch_bytes)))

    kernel = _make_kernel(scale, Bt, output_attentions, approx_softmax)
    outs = pl.pallas_call(
        kernel,
        out_shape=tuple(out_shapes),
        grid=grid,
        in_specs=in_specs,
        out_specs=tuple(out_specs),
        compiler_params=pltpu.CompilerParams(
            dimension_semantics=("parallel",),   # shards the B-grid across TCs on v7x
            vmem_limit_bytes=vmem_limit),
        cost_estimate=cost,
    )(q_p, hid_mm, bias_p)

    ctx = outs[0][:B, :E, :H]
    if output_attentions:
        probs = outs[1][:B, :E, :S]
        return ctx, probs
    return (ctx,)


def _reference(entity_emb, hidden_states, attention_mask, wq_t, bq, wk_t, bk):
    H = entity_emb.shape[-1]
    q = entity_emb @ wq_t + bq                                    # (E, H)
    k = hidden_states @ wk_t + bk                                 # (B, S, H)
    scores = jnp.einsum("eh,bsh->bes", q, k) / math.sqrt(H)
    scores = scores + (1.0 - attention_mask[:, None, :]) * -10000.0
    probs = jax.nn.softmax(scores, axis=-1)
    ctx = jnp.einsum("bes,bsh->beh", probs, hidden_states)
    return ctx, probs


if __name__ == "__main__":
    # Small shapes consistent with the module's forward.
    B, S, H, E = 2, 8, 32, 4

    key = jax.random.PRNGKey(0)
    k_ent, k_hid, k_wq, k_bq, k_wk, k_bk = jax.random.split(key, 6)

    entity_emb = jax.random.normal(k_ent, (E, H), dtype=jnp.float32)
    hidden_states = jax.random.normal(k_hid, (B, S, H), dtype=jnp.float32)

    # nn.Linear-style deterministic init: uniform(-1/sqrt(H), 1/sqrt(H)).
    bound = 1.0 / math.sqrt(H)
    wq = jax.random.uniform(k_wq, (H, H), minval=-bound, maxval=bound, dtype=jnp.float32)
    bq = jax.random.uniform(k_bq, (1, H), minval=-bound, maxval=bound, dtype=jnp.float32)
    wk = jax.random.uniform(k_wk, (H, H), minval=-bound, maxval=bound, dtype=jnp.float32)
    bk = jax.random.uniform(k_bk, (1, H), minval=-bound, maxval=bound, dtype=jnp.float32)
    # Pre-transpose PyTorch (out,in) weight layout -> (in,out) so x @ W applies.
    wq_t = wq.T
    wk_t = wk.T

    # Attention mask: 1 = attend, 0 = masked (last two positions of batch 1 masked).
    attention_mask = jnp.ones((B, S), dtype=jnp.float32).at[1, -2:].set(0.0)

    ref_ctx, ref_probs = _reference(entity_emb, hidden_states, attention_mask,
                                    wq_t, bq, wk_t, bk)

    # --- f32 matmul path: tight tolerances ---
    ctx32, probs32 = entity_attention(entity_emb, hidden_states, attention_mask,
                                      wq_t, bq, wk_t, bk,
                                      output_attentions=True, use_bf16=False)
    jax.block_until_ready((ctx32, probs32))
    assert jnp.allclose(ctx32, ref_ctx, atol=1e-4, rtol=1e-4)
    assert jnp.allclose(probs32, ref_probs, atol=5e-5, rtol=1e-3)

    # --- default bf16 matmul path (bf16 outputs too): relaxed tolerances ---
    ctx_bf, probs_bf = entity_attention(entity_emb, hidden_states, attention_mask,
                                        wq_t, bq, wk_t, bk,
                                        output_attentions=True, use_bf16=True,
                                        out_dtype=jnp.bfloat16)
    jax.block_until_ready((ctx_bf, probs_bf))
    assert jnp.allclose(ctx_bf.astype(jnp.float32), ref_ctx, atol=3e-2, rtol=3e-2)
    assert jnp.allclose(probs_bf.astype(jnp.float32), ref_probs, atol=1e-2)

    # --- single-output path (output_attentions=False) ---
    (ctx_only,) = entity_attention(entity_emb, hidden_states, attention_mask,
                                   wq_t, bq, wk_t, bk,
                                   output_attentions=False, use_bf16=True)
    jax.block_until_ready(ctx_only)
    assert jnp.allclose(ctx_only, ref_ctx, atol=3e-2, rtol=3e-2)

    print("KERNEL_OK")
</pallas_src>

<mosaic_0001>
module attributes {stable_mosaic.version = 11 : i64} {
  func.func @kernel(%arg0: i32, %arg1: memref<8x128xf32, #tpu.memory_space<vmem>>, %arg2: memref<1x128x128xf32, #tpu.memory_space<vmem>>, %arg3: memref<1x1x128xf32, #tpu.memory_space<vmem>>, %arg4: memref<1x8x128xf32, #tpu.memory_space<vmem>>, %arg5: memref<1x8x128xf32, #tpu.memory_space<vmem>>) attributes {dimension_semantics = [#tpu.dimension_semantics<parallel>], iteration_bounds = array<i64: 2>, scalar_prefetch = 0 : i64, scratch_operands = 0 : i64, tpu.core_type = #tpu.core_type<tc>, window_params = [{pipeline_mode = #tpu.pipeline_mode<synchronous>, transform_indices = @transform_0, window_bounds = array<i64: 8, 128>}, {transform_indices = @transform_1, window_bounds = array<i64: 1, 128, 128>}, {transform_indices = @transform_2, window_bounds = array<i64: 1, 1, 128>}, {transform_indices = @transform_3, window_bounds = array<i64: 1, 8, 128>}, {transform_indices = @transform_4, window_bounds = array<i64: 1, 8, 128>}]} {
    %c0 = arith.constant 0 : index
    %c0_0 = arith.constant 0 : index
    %0 = vector.load %arg1[%c0, %c0_0] : memref<8x128xf32, #tpu.memory_space<vmem>>, vector<8x128xf32>
    %c0_1 = arith.constant 0 : index
    %c0_2 = arith.constant 0 : index
    %c0_3 = arith.constant 0 : index
    %1 = vector.load %arg2[%c0_1, %c0_2, %c0_3] : memref<1x128x128xf32, #tpu.memory_space<vmem>>, vector<1x128x128xf32>
    %2 = vector.shape_cast %1 : vector<1x128x128xf32> to vector<128x128xf32>
    %cst = arith.constant dense<0.000000e+00> : vector<8x128xf32>
    %3 = tpu.matmul %0, %2, %cst {dimension_numbers = #tpu.dot_dimension_numbers<[1], [1], [0], [0], [0, 0, 1, 0], [], []>} : vector<8x128xf32>, vector<128x128xf32>, vector<8x128xf32> -> vector<8x128xf32>
    %cst_4 = arith.constant 0.176776692 : f32
    %4 = vector.broadcast %cst_4 : f32 to vector<8x128xf32>
    %5 = arith.mulf %3, %4 : vector<8x128xf32>
    %c0_5 = arith.constant 0 : index
    %c0_6 = arith.constant 0 : index
    %c0_7 = arith.constant 0 : index
    %6 = vector.load %arg3[%c0_5, %c0_6, %c0_7] : memref<1x1x128xf32, #tpu.memory_space<vmem>>, vector<1x1x128xf32>
    %7 = vector.shape_cast %6 : vector<1x1x128xf32> to vector<1x128xf32>
    %8 = vector.broadcast %7 : vector<1x128xf32> to vector<8x128xf32>
    %9 = arith.addf %5, %8 : vector<8x128xf32>
    %cst_8 = arith.constant dense<0xFF800000> : vector<8xf32>
    %10 = vector.multi_reduction <maximumf>, %9, %cst_8 [1] : vector<8x128xf32> to vector<8xf32>
    %11 = vector.shape_cast %10 : vector<8xf32> to vector<8x1xf32>
    %12 = vector.broadcast %11 : vector<8x1xf32> to vector<8x128xf32>
    %13 = arith.subf %9, %12 : vector<8x128xf32>
    %14 = math.exp %13 : vector<8x128xf32>
    %cst_9 = arith.constant dense<0.000000e+00> : vector<8xf32>
    %15 = vector.multi_reduction <add>, %14, %cst_9 [1] : vector<8x128xf32> to vector<8xf32>
    %16 = vector.shape_cast %15 : vector<8xf32> to vector<8x1xf32>
    %17 = tpu.reciprocal %16 : vector<8x1xf32> -> vector<8x1xf32>
    %18 = vector.broadcast %17 : vector<8x1xf32> to vector<8x128xf32>
    %19 = arith.mulf %14, %18 : vector<8x128xf32>
    %cst_10 = arith.constant dense<0.000000e+00> : vector<8x128xf32>
    %20 = tpu.matmul %19, %2, %cst_10 {dimension_numbers = #tpu.dot_dimension_numbers<[1], [0], [0], [1], [0, 0, 1, 1], [], []>} : vector<8x128xf32>, vector<128x128xf32>, vector<8x128xf32> -> vector<8x128xf32>
    %c0_11 = arith.constant 0 : index
    %c0_12 = arith.constant 0 : index
    %c0_13 = arith.constant 0 : index
    %21 = vector.load %arg4[%c0_11, %c0_12, %c0_13] : memref<1x8x128xf32, #tpu.memory_space<vmem>>, vector<1x8x128xf32>
    %22 = vector.shape_cast %21 : vector<1x8x128xf32> to vector<8x128xf32>
    %23 = vector.shape_cast %20 : vector<8x128xf32> to vector<1x8x128xf32>
    tpu.vector_store %arg4[%c0_11, %c0_12, %c0_13], %23 {strides = array<i32>} : memref<1x8x128xf32, #tpu.memory_space<vmem>>, vector<1x8x128xf32>,
    %c0_14 = arith.constant 0 : index
    %c0_15 = arith.constant 0 : index
    %c0_16 = arith.constant 0 : index
    %24 = vector.load %arg5[%c0_14, %c0_15, %c0_16] : memref<1x8x128xf32, #tpu.memory_space<vmem>>, vector<1x8x128xf32>
    %25 = vector.shape_cast %24 : vector<1x8x128xf32> to vector<8x128xf32>
    %26 = vector.shape_cast %19 : vector<8x128xf32> to vector<1x8x128xf32>
    tpu.vector_store %arg5[%c0_14, %c0_15, %c0_16], %26 {strides = array<i32>} : memref<1x8x128xf32, #tpu.memory_space<vmem>>, vector<1x8x128xf32>,
    return
  }
  func.func @transform_0(%arg0: i32) -> (i32, i32) {
    %c0_i32 = arith.constant 0 : i32
    %c0_i32_0 = arith.constant 0 : i32
    %c0_i32_1 = arith.constant 0 : i32
    return %c0_i32, %c0_i32_0 : i32, i32
  }
  func.func @transform_1(%arg0: i32) -> (i32, i32, i32) {
    %c0_i32 = arith.constant 0 : i32
    %c0_i32_0 = arith.constant 0 : i32
    %c0_i32_1 = arith.constant 0 : i32
    return %arg0, %c0_i32, %c0_i32_0 : i32, i32, i32
  }
  func.func @transform_2(%arg0: i32) -> (i32, i32, i32) {
    %c0_i32 = arith.constant 0 : i32
    %c0_i32_0 = arith.constant 0 : i32
    %c0_i32_1 = arith.constant 0 : i32
    return %arg0, %c0_i32, %c0_i32_0 : i32, i32, i32
  }
  func.func @transform_3(%arg0: i32) -> (i32, i32, i32) {
    %c0_i32 = arith.constant 0 : i32
    %c0_i32_0 = arith.constant 0 : i32
    %c0_i32_1 = arith.constant 0 : i32
    return %arg0, %c0_i32, %c0_i32_0 : i32, i32, i32
  }
  func.func @transform_4(%arg0: i32) -> (i32, i32, i32) {
    %c0_i32 = arith.constant 0 : i32
    %c0_i32_0 = arith.constant 0 : i32
    %c0_i32_1 = arith.constant 0 : i32
    return %arg0, %c0_i32, %c0_i32_0 : i32, i32, i32
  }
}

</mosaic_0001>

<llo_original>
// kernel: tpu_custom_call.1
$region0: #{tpu_custom_call.1}
  #allocation0 [shape = 'u32[]', space=smem, size = 0x4, offset = 0x4, fixed_abs, tag = 'smem constant byte address 0x4 - core index']
  #allocation1 [shape = 'u32[144,128]{1,0:T(1,128)}', space=vmem, size = 0x12000, scoped, tag = 'internal scratch']
  %s0 = inlined_call_operand.hbm [shape: f32[8,128], index: 0, kind: input, shape index: {}]
  %s1 = inlined_call_operand.hbm [shape: f32[2,128,128], index: 1, kind: input, shape index: {}]
  %s2 = inlined_call_operand.vmem [shape: f32[2,1,128], index: 2, kind: input, shape index: {}]
  %s3 = inlined_call_operand.hbm [shape: f32[2,8,128], index: 3, kind: output, shape index: {0}]
  %s4 = inlined_call_operand.hbm [shape: f32[2,8,128], index: 4, kind: output, shape index: {1}]
  %5 = xla_tuple %s3, %s4
  %s6 = sld [smem:[#allocation0]]
  $region61: #{tpu_custom_call.1} parent=0
    _
  %s8 = ssub.s32 1, %s6
  %s9 = scalar_select 0, %s8, %s6
  $region1: #{tpu_custom_call.1} parent=0
    #allocation2 [shape = 'u8[4096]{0}', space=vmem, size = 0x1000, scoped, tag = 'input window, operand 0, single buffered']
    #allocation3 [shape = 's32[2]{0}', space=sflag, size = 0x8, scoped, tag = 'scoped memory for tpu_custom_call.1']
    #allocation4 [shape = 's32[2]{0}', space=sflag, size = 0x8, scoped, tag = 'scoped memory for tpu_custom_call.1']
    #allocation5 [shape = 'u8[131072]{0}', space=vmem, size = 0x20000, scoped, tag = 'input window, operand 1']
    #allocation6 [shape = 's32[2]{0}', space=sflag, size = 0x8, scoped, tag = 'scoped memory for tpu_custom_call.1']
    #allocation7 [shape = 'u8[8192]{0}', space=vmem, size = 0x2000, scoped, tag = 'output window, operand 0']
    #allocation8 [shape = 'u8[8192]{0}', space=vmem, size = 0x2000, scoped, tag = 'output window, operand 1']
    #allocation9 [shape = 's32[2]{0}', space=sflag, size = 0x8, scoped, tag = 'scoped memory for tpu_custom_call.1']
    %10 = vsyncpa [#allocation3], 0
    %11 = vsyncpa [#allocation6], 0
    %s12 = scalar_lea.sflag [#allocation6], 1
    %13 = vsyncpa %s12, 0
    %14 = vsyncpa [#allocation4], 0
    %s15 = scalar_lea.sflag [#allocation4], 1
    %16 = vsyncpa %s15, 0
    %17 = vsyncpa [#allocation9], 0
    %s18 = scalar_lea.sflag [#allocation9], 1
    %19 = vsyncpa %s18, 0
    loop: start=0, step=1, limit=4
    $region2: #{tpu_custom_call.1} parent=1 // loop_pre_header
      _
    $region3: #{tpu_custom_call.1} parent=1 // loop_header
      %s21 = sphi 0, %s25
      %p22 = scmp.ge.s32.totalorder %s21, 4
      %s29 = sphi 0, %s29
      %s31 = sphi 0, %s29
      %s32 = sphi 0, %s31
      %s46 = sphi 0, %s32
      %s52 = sphi 0, %s54
      %s55 = sphi 0, %s52
      %s56 = sphi 0, %s55
      %s72 = sphi 0, %s56
      %s78 = sphi 0, %s80
      %s81 = sphi 0, %s78
      %s82 = sphi 0, %s81
      %s98 = sphi 0, %s82
      %s104 = sphi 0, %s106
      %s107 = sphi 0, %s104
      %s108 = sphi 0, %s107
      %s124 = sphi 0, %s108
      %s130 = sphi 0, %s132
      %s133 = sphi 0, %s130
      %s134 = sphi 0, %s133
      %s150 = sphi 0, %s134
    $region4: #{tpu_custom_call.1} parent=1 // loop_header_branch
      %24 = sbr.rel (%p22) target = $region8
    $region5: #{tpu_custom_call.1} parent=1 // loop_body
      %s26 = ssub.s32 %s21, 1
      %s27 = ssub.s32 %s21, 2
      %s28 = sadd.s32 %s21, 1
      %s30 = sadd.s32 %s29, 1
      %p33 = scmp.eq.s32.totalorder %s21, 1
      %p34 = scmp.ne.s32.totalorder %s29, %s31
      %p35 = scmp.eq.s32.totalorder %s21, 0
      %p36 = por %p34, %p35
      %p37 = scmp.ne.s32.totalorder %s29, %s31
      %p38 = scmp.eq.s32.totalorder %s26, 1
      %p39 = por %p37, %p38
      %p40 = scmp.ne.s32.totalorder %s31, %s32
      %p41 = scmp.eq.s32.totalorder %s26, 0
      %p42 = por %p40, %p41
      %p43 = scmp.ne.s32.totalorder %s31, %s32
      %p44 = scmp.eq.s32.totalorder %s27, 1
      %p45 = por %p43, %p44
      %p47 = scmp.ne.s32.totalorder %s32, %s46
      %p48 = scmp.eq.s32.totalorder %s27, 0
      %p49 = por %p47, %p48
      %s50 = ssub.s32 %s21, %s28
      %p51 = scmp.eq.s32.totalorder %s50, 0
      %s53 = sadd.s32 %s52, 1
      %s54 = scalar_select %p51, %s52, %s53
      %p57 = pneg %p51
      %p58 = scmp.eq.s32.totalorder %s21, 1
      %p59 = por %p57, %p58
      %p60 = scmp.ne.s32.totalorder %s52, %s55
      %p61 = scmp.eq.s32.totalorder %s21, 0
      %p62 = por %p60, %p61
      %p63 = scmp.ne.s32.totalorder %s52, %s55
      %p64 = scmp.eq.s32.totalorder %s26, 1
      %p65 = por %p63, %p64
      %p66 = scmp.ne.s32.totalorder %s55, %s56
      %p67 = scmp.eq.s32.totalorder %s26, 0
      %p68 = por %p66, %p67
      %p69 = scmp.ne.s32.totalorder %s55, %s56
      %p70 = scmp.eq.s32.totalorder %s27, 1
      %p71 = por %p69, %p70
      %p73 = scmp.ne.s32.totalorder %s56, %s72
      %p74 = scmp.eq.s32.totalorder %s27, 0
      %p75 = por %p73, %p74
      %s76 = ssub.s32 %s21, %s28
      %p77 = scmp.eq.s32.totalorder %s76, 0
      %s79 = sadd.s32 %s78, 1
      %s80 = scalar_select %p77, %s78, %s79
      %p83 = pneg %p77
      %p84 = scmp.eq.s32.totalorder %s21, 1
      %p85 = por %p83, %p84
      %p86 = scmp.ne.s32.totalorder %s78, %s81
      %p87 = scmp.eq.s32.totalorder %s21, 0
      %p88 = por %p86, %p87
      %p89 = scmp.ne.s32.totalorder %s78, %s81
      %p90 = scmp.eq.s32.totalorder %s26, 1
      %p91 = por %p89, %p90
      %p92 = scmp.ne.s32.totalorder %s81, %s82
      %p93 = scmp.eq.s32.totalorder %s26, 0
      %p94 = por %p92, %p93
      %p95 = scmp.ne.s32.totalorder %s81, %s82
      %p96 = scmp.eq.s32.totalorder %s27, 1
      %p97 = por %p95, %p96
      %p99 = scmp.ne.s32.totalorder %s82, %s98
      %p100 = scmp.eq.s32.totalorder %s27, 0
      %p101 = por %p99, %p100
      %s102 = ssub.s32 %s21, %s28
      %p103 = scmp.eq.s32.totalorder %s102, 0
      %s105 = sadd.s32 %s104, 1
      %s106 = scalar_select %p103, %s104, %s105
      %p109 = pneg %p103
      %p110 = scmp.eq.s32.totalorder %s21, 1
      %p111 = por %p109, %p110
      %p112 = scmp.ne.s32.totalorder %s104, %s107
      %p113 = scmp.eq.s32.totalorder %s21, 0
      %p114 = por %p112, %p113
      %p115 = scmp.ne.s32.totalorder %s104, %s107
      %p116 = scmp.eq.s32.totalorder %s26, 1
      %p117 = por %p115, %p116
      %p118 = scmp.ne.s32.totalorder %s107, %s108
      %p119 = scmp.eq.s32.totalorder %s26, 0
      %p120 = por %p118, %p119
      %p121 = scmp.ne.s32.totalorder %s107, %s108
      %p122 = scmp.eq.s32.totalorder %s27, 1
      %p123 = por %p121, %p122
      %p125 = scmp.ne.s32.totalorder %s108, %s124
      %p126 = scmp.eq.s32.totalorder %s27, 0
      %p127 = por %p125, %p126
      %s128 = ssub.s32 %s21, %s28
      %p129 = scmp.eq.s32.totalorder %s128, 0
      %s131 = sadd.s32 %s130, 1
      %s132 = scalar_select %p129, %s130, %s131
      %p135 = pneg %p129
      %p136 = scmp.eq.s32.totalorder %s21, 1
      %p137 = por %p135, %p136
      %p138 = scmp.ne.s32.totalorder %s130, %s133
      %p139 = scmp.eq.s32.totalorder %s21, 0
      %p140 = por %p138, %p139
      %p141 = scmp.ne.s32.totalorder %s130, %s133
      %p142 = scmp.eq.s32.totalorder %s26, 1
      %p143 = por %p141, %p142
      %p144 = scmp.ne.s32.totalorder %s133, %s134
      %p145 = scmp.eq.s32.totalorder %s26, 0
      %p146 = por %p144, %p145
      %p147 = scmp.ne.s32.totalorder %s133, %s134
      %p148 = scmp.eq.s32.totalorder %s27, 1
      %p149 = por %p147, %p148
      %p151 = scmp.ne.s32.totalorder %s134, %s150
      %p152 = scmp.eq.s32.totalorder %s27, 0
      %p153 = por %p151, %p152
      %p154 = scmp.le.s32.totalorder 1, %s21
      %p155 = scmp.lt.s32.totalorder %s21, 3
      %p156 = pnand %p154, %p155
      %p157 = pneg %p156
      // Predicated region
      $region9: #{tpu_custom_call.1} parent=5 // pred_check
        _
      $region10: #{tpu_custom_call.1} parent=5 // pred_check_branch
        %159 = sbr.rel (%p156) target = $region12
      $region11: #{tpu_custom_call.1} parent=5 // pred_region
        %s160 = ssub.s32 %s21, 1
        // Predicated region
        $region13: #{tpu_custom_call.1} parent=11 // pred_check
          %p161 = pneg %p42
        $region14: #{tpu_custom_call.1} parent=11 // pred_check_branch
          %163 = sbr.rel (%p161) target = $region16
        $region15: #{tpu_custom_call.1} parent=11 // pred_region
          %s165 = ssub.s32 128, 128
          %166 = vsyncadd [#allocation3], %s165
          %s168 = sshll.u32 [#allocation2], 4
          %s169 = int_to_ptr.vmem [resolvable:$true] %s168
          %171 = dma.hbm_to_vmem [thread:$0]  %s0, 128, %s169, [#allocation3]
        $region16: #{tpu_custom_call.1} parent=11 // pred_fallthru
          _
      $region12: #{tpu_custom_call.1} parent=5 // pred_fallthru
        _
      %p172 = scmp.lt.s32.totalorder %s21, 2
      // Predicated region
      $region17: #{tpu_custom_call.1} parent=5 // pred_check
        %p173 = pneg %p172
      $region18: #{tpu_custom_call.1} parent=5 // pred_check_branch
        %175 = sbr.rel (%p173) target = $region20
      $region19: #{tpu_custom_call.1} parent=5 // pred_region
        // Predicated region
        $region21: #{tpu_custom_call.1} parent=19 // pred_check
          %p176 = pneg %p62
        $region22: #{tpu_custom_call.1} parent=19 // pred_check_branch
          %178 = sbr.rel (%p176) target = $region24
        $region23: #{tpu_custom_call.1} parent=19 // pred_region
          %s179 = sand.u32 %s52, 1
          %s180 = scalar_lea.sflag [#allocation6], %s179
          %s181 = sand.u32 %s52, 1
          %s182 = smul.addr %s181, 128
          %s183 = scalar_lea.vmem [#allocation5], %s182
          %s185 = ssub.s32 2048, 2048
          %186 = vsyncadd %s180, %s185
          %s187 = smul.addr %s21, 16
          %s188 = smul.addr %s187, 128
          %s189 = scalar_lea.hbm %s1, %s188
          %s190 = sshll.u32 %s183, 4
          %s191 = int_to_ptr.vmem [resolvable:$true] %s190
          %196 = dma.hbm_to_vmem [thread:$0]  %s189, 2048, %s191, %s180, 128, 128, 8
        $region24: #{tpu_custom_call.1} parent=19 // pred_fallthru
          _
        // Predicated region
        $region25: #{tpu_custom_call.1} parent=19 // pred_check
          %p197 = pneg %p88
        $region26: #{tpu_custom_call.1} parent=19 // pred_check_branch
          %199 = sbr.rel (%p197) target = $region28
        $region27: #{tpu_custom_call.1} parent=19 // pred_region
          %p200 = scmp.lt.s32.totalorder %s21, 1
          %s201 = scalar_select %p200, %s21, 1
          %s202 = scalar_lea.vmem %s2, %s201
        $region28: #{tpu_custom_call.1} parent=19 // pred_fallthru
          _
      $region20: #{tpu_custom_call.1} parent=5 // pred_fallthru
        _
      %p203 = scmp.le.s32.totalorder 1, %s21
      %p204 = scmp.lt.s32.totalorder %s21, 3
      %p205 = pnand %p203, %p204
      %p206 = pneg %p205
      // Predicated region
      $region29: #{tpu_custom_call.1} parent=5 // pred_check
        _
      $region30: #{tpu_custom_call.1} parent=5 // pred_check_branch
        %208 = sbr.rel (%p205) target = $region32
      $region31: #{tpu_custom_call.1} parent=5 // pred_region
        %s209 = ssub.s32 %s21, 1
        // Predicated region
        $region33: #{tpu_custom_call.1} parent=31 // pred_check
          %p210 = pneg %p42
        $region34: #{tpu_custom_call.1} parent=31 // pred_check_branch
          %212 = sbr.rel (%p210) target = $region36
        $region35: #{tpu_custom_call.1} parent=31 // pred_region
          %213 = dma.done [#allocation3], 128
        $region36: #{tpu_custom_call.1} parent=31 // pred_fallthru
          _
        %s214 = sand.u32 %s55, 1
        %s215 = scalar_lea.sflag [#allocation6], %s214
        %s216 = sand.u32 %s55, 1
        %s217 = smul.addr %s216, 128
        %s218 = scalar_lea.vmem [#allocation5], %s217
        // Predicated region
        $region37: #{tpu_custom_call.1} parent=31 // pred_check
          %p219 = pneg %p68
        $region38: #{tpu_custom_call.1} parent=31 // pred_check_branch
          %221 = sbr.rel (%p219) target = $region40
        $region39: #{tpu_custom_call.1} parent=31 // pred_region
          %222 = dma.done %s215, 2048
        $region40: #{tpu_custom_call.1} parent=31 // pred_fallthru
          _
        %p223 = pneg %p42
        %p224 = pneg %p39
        %s225 = sand.u32 %s55, 1
        %s226 = scalar_lea.sflag [#allocation6], %s225
        %s227 = sand.u32 %s55, 1
        %s228 = smul.addr %s227, 128
        %s229 = scalar_lea.vmem [#allocation5], %s228
        %p230 = pneg %p68
        %p231 = pneg %p65
        %p232 = scmp.lt.s32.totalorder %s26, 1
        %s233 = scalar_select %p232, %s26, 1
        %s234 = scalar_lea.vmem %s2, %s233
        %p235 = pneg %p94
        %p236 = pneg %p91
        %p237 = pneg %p120
        %p238 = pneg %p117
        %s239 = sand.u32 %s107, 1
        %s240 = scalar_lea.sflag [#allocation4], %s239
        %s241 = sand.u32 %s107, 1
        %s242 = smul.addr %s241, 8
        %s243 = scalar_lea.vmem [#allocation7], %s242
        %p244 = pneg %p146
        %p245 = pneg %p143
        %s246 = sand.u32 %s133, 1
        %s247 = scalar_lea.sflag [#allocation9], %s246
        %s248 = sand.u32 %s133, 1
        %s249 = smul.addr %s248, 8
        %s250 = scalar_lea.vmem [#allocation8], %s249
        %p251 = scmp.lt.s32.totalorder %s26, 1
        %s252 = scalar_select %p251, %s26, 1
        %s253 = scalar_lea.vmem %s2, %s252
        %v254 = vld [vmem:[#allocation2] sm:$0xff]
        %v255 = vld [vmem:[%s218] sm:$0xff]
        %v256 = vld [vmem:[%s218 + $0x8] sm:$0xff]
        %v257 = vld [vmem:[%s218 + $0x10] sm:$0xff]
        %v258 = vld [vmem:[%s218 + $0x18] sm:$0xff]
        %v259 = vld [vmem:[%s218 + $0x20] sm:$0xff]
        %v260 = vld [vmem:[%s218 + $0x28] sm:$0xff]
        %v261 = vld [vmem:[%s218 + $0x30] sm:$0xff]
        %v262 = vld [vmem:[%s218 + $0x38] sm:$0xff]
        %v263 = vld [vmem:[%s218 + $0x40] sm:$0xff]
        %v264 = vld [vmem:[%s218 + $0x48] sm:$0xff]
        %v265 = vld [vmem:[%s218 + $0x50] sm:$0xff]
        %v266 = vld [vmem:[%s218 + $0x58] sm:$0xff]
        %v267 = vld [vmem:[%s218 + $0x60] sm:$0xff]
        %v268 = vld [vmem:[%s218 + $0x68] sm:$0xff]
        %v269 = vld [vmem:[%s218 + $0x70] sm:$0xff]
        %v270 = vld [vmem:[%s218 + $0x78] sm:$0xff]
        %271 = vmatprep.subr.mxu0 0.0
        %272 = vmatpush1.xpose.msra.mxu0 %v255
        %273 = vmatprep.subr.mxu0 0.0
        %274 = vmatpush1.xpose.msra.mxu0 %v256
        %275 = vmatprep.subr.mxu0 0.0
        %276 = vmatpush1.xpose.msra.mxu0 %v257
        %277 = vmatprep.subr.mxu0 0.0
        %278 = vmatpush1.xpose.msra.mxu0 %v258
        %279 = vmatprep.subr.mxu0 0.0
        %280 = vmatpush1.xpose.msra.mxu0 %v259
        %281 = vmatprep.subr.mxu0 0.0
        %282 = vmatpush1.xpose.msra.mxu0 %v260
        %283 = vmatprep.subr.mxu0 0.0
        %284 = vmatpush1.xpose.msra.mxu0 %v261
        %285 = vmatprep.subr.mxu0 0.0
        %286 = vmatpush1.xpose.msra.mxu0 %v262
        %287 = vmatprep.subr.mxu0 0.0
        %288 = vmatpush1.xpose.msra.mxu0 %v263
        %289 = vmatprep.subr.mxu0 0.0
        %290 = vmatpush1.xpose.msra.mxu0 %v264
        %291 = vmatprep.subr.mxu0 0.0
        %292 = vmatpush1.xpose.msra.mxu0 %v265
        %293 = vmatprep.subr.mxu0 0.0
        %294 = vmatpush1.xpose.msra.mxu0 %v266
        %295 = vmatprep.subr.mxu0 0.0
        %296 = vmatpush1.xpose.msra.mxu0 %v267
        %297 = vmatprep.subr.mxu0 0.0
        %298 = vmatpush1.xpose.msra.mxu0 %v268
        %299 = vmatprep.subr.mxu0 0.0
        %300 = vmatpush1.xpose.msra.mxu0 %v269
        %301 = vmatprep.subr.mxu0 0.0
        %302 = vmatpush1.xpose.msra.mxu0 %v270
        %303 = vmatprep.subr.mxu0 0.0
        %304 = vmatpush1.xpose.msra.mxu0 0.0
        %305 = vmatprep.subr.mxu0 0.0
        %306 = vmatpush1.xpose.msra.mxu0 0.0
        %307 = vmatprep.subr.mxu0 0.0
        %308 = vmatpush1.xpose.msra.mxu0 0.0
        %309 = vmatprep.subr.mxu0 0.0
        %310 = vmatpush1.xpose.msra.mxu0 0.0
        %311 = vmatprep.subr.mxu0 0.0
        %312 = vmatpush1.xpose.msra.mxu0 0.0
        %313 = vmatprep.subr.mxu0 0.0
        %314 = vmatpush1.xpose.msra.mxu0 0.0
        %315 = vmatprep.subr.mxu0 0.0
        %316 = vmatpush1.xpose.msra.mxu0 0.0
        %317 = vmatprep.subr.mxu0 0.0
        %318 = vmatpush1.xpose.msra.mxu0 0.0
        %319 = vmatprep.subr.mxu0 0.0
        %320 = vmatpush1.xpose.msra.mxu0 0.0
        %321 = vmatprep.subr.mxu0 0.0
        %322 = vmatpush1.xpose.msra.mxu0 0.0
        %323 = vmatprep.subr.mxu0 0.0
        %324 = vmatpush1.xpose.msra.mxu0 0.0
        %325 = vmatprep.subr.mxu0 0.0
        %326 = vmatpush1.xpose.msra.mxu0 0.0
        %327 = vmatprep.subr.mxu0 0.0
        %328 = vmatpush1.xpose.msra.mxu0 0.0
        %329 = vmatprep.subr.mxu0 0.0
        %330 = vmatpush1.xpose.msra.mxu0 0.0
        %331 = vmatprep.subr.mxu0 0.0
        %332 = vmatpush1.xpose.msra.mxu0 0.0
        %333 = vmatprep.subr.mxu0 0.0
        %334 = vmatpush1.xpose.msra.mxu0 0.0
        %335 = vmatprep.mubr.f32.mxu0 0.0
        %336 = vmatmul.mubr.f32.gmra.mrb[0].mxu0 %v254
        %v337 = vpop.f32.mrb[0].mxu0
        %v338 = vadd.f32 0.0, %v337
        %v339 = vpop.f32.mrb[0].mxu0
        %340 = vdwg.mxu0
        %v341 = vmul.f32 %v338, 0.17677669
        %v342 = vld [vmem:[%s253] sm:$0x1]
        %v344 = vlaneseq
        %v345 = vshrl.u32 %v344, 7
        %v346 = vsub.s32 0, %v345
        %v347 = vrot.slane %v342, %v346
        %v349 = vadd.f32 %v341, %v347
        %350 = vmax.xlane.f32.xlu0 %v349
        %v351 = vpop.xlane.xlu0 %350
        %v352 = vsub.f32 %v349, %v351
        %v353 = vmul.f32 %v352, 1.442695
        %v354 = vpow.pop %v353
        %355 = vadd.xlane.f32.xlu0 %v354
        %v356 = vpop.xlane.xlu0 %355
        %v357 = vrcp.pop %v356
        %v358 = vmul.f32 %v354, %v357
        %359 = vmatprep.subr.mxu0 0.0
        %360 = vmatpush1.msra.mxu0 %v255
        %361 = vmatprep.subr.mxu0 0.0
        %362 = vmatpush1.msra.mxu0 %v256
        %363 = vmatprep.subr.mxu0 0.0
        %364 = vmatpush1.msra.mxu0 %v257
        %365 = vmatprep.subr.mxu0 0.0
        %366 = vmatpush1.msra.mxu0 %v258
        %367 = vmatprep.subr.mxu0 0.0
        %368 = vmatpush1.msra.mxu0 %v259
        %369 = vmatprep.subr.mxu0 0.0
        %370 = vmatpush1.msra.mxu0 %v260
        %371 = vmatprep.subr.mxu0 0.0
        %372 = vmatpush1.msra.mxu0 %v261
        %373 = vmatprep.subr.mxu0 0.0
        %374 = vmatpush1.msra.mxu0 %v262
        %375 = vmatprep.subr.mxu0 0.0
        %376 = vmatpush1.msra.mxu0 %v263
        %377 = vmatprep.subr.mxu0 0.0
        %378 = vmatpush1.msra.mxu0 %v264
        %379 = vmatprep.subr.mxu0 0.0
        %380 = vmatpush1.msra.mxu0 %v265
        %381 = vmatprep.subr.mxu0 0.0
        %382 = vmatpush1.msra.mxu0 %v266
        %383 = vmatprep.subr.mxu0 0.0
        %384 = vmatpush1.msra.mxu0 %v267
        %385 = vmatprep.subr.mxu0 0.0
        %386 = vmatpush1.msra.mxu0 %v268
        %387 = vmatprep.subr.mxu0 0.0
        %388 = vmatpush1.msra.mxu0 %v269
        %389 = vmatprep.subr.mxu0 0.0
        %390 = vmatpush1.msra.mxu0 %v270
        %391 = vmatprep.subr.mxu0 0.0
        %392 = vmatpush1.msra.mxu0 0.0
        %393 = vmatprep.subr.mxu0 0.0
        %394 = vmatpush1.msra.mxu0 0.0
        %395 = vmatprep.subr.mxu0 0.0
        %396 = vmatpush1.msra.mxu0 0.0
        %397 = vmatprep.subr.mxu0 0.0
        %398 = vmatpush1.msra.mxu0 0.0
        %399 = vmatprep.subr.mxu0 0.0
        %400 = vmatpush1.msra.mxu0 0.0
        %401 = vmatprep.subr.mxu0 0.0
        %402 = vmatpush1.msra.mxu0 0.0
        %403 = vmatprep.subr.mxu0 0.0
        %404 = vmatpush1.msra.mxu0 0.0
        %405 = vmatprep.subr.mxu0 0.0
        %406 = vmatpush1.msra.mxu0 0.0
        %407 = vmatprep.subr.mxu0 0.0
        %408 = vmatpush1.msra.mxu0 0.0
        %409 = vmatprep.subr.mxu0 0.0
        %410 = vmatpush1.msra.mxu0 0.0
        %411 = vmatprep.subr.mxu0 0.0
        %412 = vmatpush1.msra.mxu0 0.0
        %413 = vmatprep.subr.mxu0 0.0
        %414 = vmatpush1.msra.mxu0 0.0
        %415 = vmatprep.subr.mxu0 0.0
        %416 = vmatpush1.msra.mxu0 0.0
        %417 = vmatprep.subr.mxu0 0.0
        %418 = vmatpush1.msra.mxu0 0.0
        %419 = vmatprep.subr.mxu0 0.0
        %420 = vmatpush1.msra.mxu0 0.0
        %421 = vmatprep.subr.mxu0 0.0
        %422 = vmatpush1.msra.mxu0 0.0
        %423 = vmatprep.mubr.f32.mxu0 0.0
        %424 = vmatmul.mubr.f32.gmra.mrb[0].mxu0 %v358
        %v425 = vpop.f32.mrb[0].mxu0
        %v426 = vadd.f32 0.0, %v425
        %v427 = vpop.f32.mrb[0].mxu0
        %428 = vdwg.mxu0
        %429 = vst [vmem:[%s243] sm:$0xff] %v426
        %430 = vst [vmem:[%s250] sm:$0xff] %v358
        %s431 = sand.u32 %s107, 1
        %s432 = scalar_lea.sflag [#allocation4], %s431
        %s433 = sand.u32 %s107, 1
        %s434 = smul.addr %s433, 8
        %s435 = scalar_lea.vmem [#allocation7], %s434
        %s436 = sand.u32 %s133, 1
        %s437 = scalar_lea.sflag [#allocation9], %s436
        %s438 = sand.u32 %s133, 1
        %s439 = smul.addr %s438, 8
        %s440 = scalar_lea.vmem [#allocation8], %s439
        // Predicated region
        $region41: #{tpu_custom_call.1} parent=31 // pred_check
          %p441 = pneg %p117
        $region42: #{tpu_custom_call.1} parent=31 // pred_check_branch
          %443 = sbr.rel (%p441) target = $region44
        $region43: #{tpu_custom_call.1} parent=31 // pred_region
          %s445 = ssub.s32 128, 128
          %446 = vsyncadd %s432, %s445
          %s447 = smul.addr %s26, 128
          %s448 = scalar_lea.hbm %s3, %s447
          %s450 = sshll.u32 %s435, 4
          %s451 = int_to_ptr.vmem [resolvable:$true] %s450
          %453 = dma.vmem_to_hbm [thread:$0]  %s451, 128, %s448, %s432
        $region44: #{tpu_custom_call.1} parent=31 // pred_fallthru
          _
        // Predicated region
        $region45: #{tpu_custom_call.1} parent=31 // pred_check
          %p454 = pneg %p143
        $region46: #{tpu_custom_call.1} parent=31 // pred_check_branch
          %456 = sbr.rel (%p454) target = $region48
        $region47: #{tpu_custom_call.1} parent=31 // pred_region
          %s458 = ssub.s32 128, 128
          %459 = vsyncadd %s437, %s458
          %s460 = smul.addr %s26, 128
          %s461 = scalar_lea.hbm %s4, %s460
          %s463 = sshll.u32 %s440, 4
          %s464 = int_to_ptr.vmem [resolvable:$true] %s463
          %466 = dma.vmem_to_hbm [thread:$0]  %s464, 128, %s461, %s437
        $region48: #{tpu_custom_call.1} parent=31 // pred_fallthru
          _
      $region32: #{tpu_custom_call.1} parent=5 // pred_fallthru
        _
      %p467 = scmp.le.s32.totalorder 2, %s21
      // Predicated region
      $region49: #{tpu_custom_call.1} parent=5 // pred_check
        %p468 = pneg %p467
      $region50: #{tpu_custom_call.1} parent=5 // pred_check_branch
        %470 = sbr.rel (%p468) target = $region52
      $region51: #{tpu_custom_call.1} parent=5 // pred_region
        %s471 = ssub.s32 %s21, 2
        // Predicated region
        $region53: #{tpu_custom_call.1} parent=51 // pred_check
          %p472 = pneg %p123
        $region54: #{tpu_custom_call.1} parent=51 // pred_check_branch
          %474 = sbr.rel (%p472) target = $region56
        $region55: #{tpu_custom_call.1} parent=51 // pred_region
          %s475 = sand.u32 %s108, 1
          %s476 = scalar_lea.sflag [#allocation4], %s475
          %s477 = sand.u32 %s108, 1
          %s478 = smul.addr %s477, 8
          %s479 = scalar_lea.vmem [#allocation7], %s478
          %480 = dma.done %s476, 128
        $region56: #{tpu_custom_call.1} parent=51 // pred_fallthru
          _
        // Predicated region
        $region57: #{tpu_custom_call.1} parent=51 // pred_check
          %p481 = pneg %p149
        $region58: #{tpu_custom_call.1} parent=51 // pred_check_branch
          %483 = sbr.rel (%p481) target = $region60
        $region59: #{tpu_custom_call.1} parent=51 // pred_region
          %s484 = sand.u32 %s134, 1
          %s485 = scalar_lea.sflag [#allocation9], %s484
          %s486 = sand.u32 %s134, 1
          %s487 = smul.addr %s486, 8
          %s488 = scalar_lea.vmem [#allocation8], %s487
          %489 = dma.done %s485, 128
        $region60: #{tpu_custom_call.1} parent=51 // pred_fallthru
          _
      $region52: #{tpu_custom_call.1} parent=5 // pred_fallthru
        _
    $region6: #{tpu_custom_call.1} parent=1 // loop_footer
      %s25 = sadd.s32 1, %s21
    $region7: #{tpu_custom_call.1} parent=1 // loop_footer_branch
      %20 = sbr.rel target = $region3
    $region8: #{tpu_custom_call.1} parent=1 // loop_exit
      _
    %490 = vsyncpa [#allocation3], 1
    %s491 = scalar_lea.sflag [#allocation3], 1
    %492 = vsyncpa %s491, 1
    %493 = vsyncpa [#allocation6], 1
    %s494 = scalar_lea.sflag [#allocation6], 1
    %495 = vsyncpa %s494, 1
    %496 = vsyncpa [#allocation4], 1
    %s497 = scalar_lea.sflag [#allocation4], 1
    %498 = vsyncpa %s497, 1
    %499 = vsyncpa [#allocation9], 1
    %s500 = scalar_lea.sflag [#allocation9], 1
    %501 = vsyncpa %s500, 1

</llo_original>
